<compile_context>
chip_gen: v7x
topology: tpu7x:2x2x1
jax: 0.10.0
libtpu: 0.0.40
codegen_flags: <defaults>
</compile_context>

<pallas_src>
import functools
import math

import jax
import jax.numpy as jnp
from jax.experimental import pallas as pl
from jax.experimental.pallas import tpu as pltpu


_VMEM_LIMIT = 64 * 1024 * 1024  # raised scoped-VMEM budget (v5e default is 16 MiB)


def _pick_tile(dim, prefs):
    """Largest preferred tile that divides `dim`, else the full dim (single block)."""
    for p in prefs:
        if dim % p == 0:
            return p
    return dim


# ----------------------------- Linear: y = x @ W^T + b -----------------------------
# Weights are stored pre-transposed (K, N) once at setup time; kernel is a plain
# tiled (tm,tk) @ (tk,tn) matmul with an f32 accumulator and bias add on the last
# K step.

def _linear_kernel(x_ref, wt_ref, b_ref, o_ref, acc_ref):
    @pl.when(pl.program_id(2) == 0)
    def _init():
        acc_ref[...] = jnp.zeros(acc_ref.shape, acc_ref.dtype)

    acc_ref[...] += jnp.dot(
        x_ref[...], wt_ref[...], preferred_element_type=jnp.float32
    )

    @pl.when(pl.program_id(2) == pl.num_programs(2) - 1)
    def _finalize():
        o_ref[...] = (acc_ref[...] + b_ref[...]).astype(o_ref.dtype)


def linear_pallas(x2d, w_t, bias, *, compute_dtype=jnp.float32):
    """y = x2d @ w_t + bias.  x2d: (M, K), w_t: (K, N) (pre-transposed), bias: (N,)."""
    M, K = x2d.shape
    N = w_t.shape[1]
    tm = _pick_tile(M, (512, 256, 128))
    tn = _pick_tile(N, (256, 128))
    tk = _pick_tile(K, (512, 256, 128))

    x2d = x2d.astype(compute_dtype)
    w_t = w_t.astype(compute_dtype)
    b2 = bias.reshape(1, N).astype(jnp.float32)

    return pl.pallas_call(
        _linear_kernel,
        out_shape=jax.ShapeDtypeStruct((M, N), jnp.float32),
        grid_spec=pltpu.PrefetchScalarGridSpec(
            num_scalar_prefetch=0,
            grid=(M // tm, N // tn, K // tk),
            in_specs=[
                pl.BlockSpec((tm, tk), lambda i, j, k: (i, k)),
                pl.BlockSpec((tk, tn), lambda i, j, k: (k, j)),
                pl.BlockSpec((1, tn), lambda i, j, k: (0, j)),
            ],
            out_specs=pl.BlockSpec((tm, tn), lambda i, j, k: (i, j)),
            scratch_shapes=[pltpu.VMEM((tm, tn), jnp.float32)],
        ),
        compiler_params=pltpu.CompilerParams(
            dimension_semantics=("parallel", "parallel", "arbitrary"),
            vmem_limit_bytes=_VMEM_LIMIT,
        ),
        cost_estimate=pl.CostEstimate(
            flops=2 * M * N * K,
            transcendentals=0,
            bytes_accessed=4 * (M * K + K * N + N + M * N),
        ),
    )(x2d, w_t, b2)


# --------------------- Flash attention (all heads per grid step) ---------------------
# grid = (batch, q_blocks, kv_blocks); KV axis is a reduction ("arbitrary") with an
# online softmax kept in VMEM scratch (m, l, acc).  The output is stored lane-dense
# in (B, S, H*D) layout at the final KV step.

def _flash_attn_kernel(q_ref, k_ref, v_ref, cmask_ref, pmask_ref, o_ref,
                       m_ref, l_ref, acc_ref, *, scale):
    kv = pl.program_id(2)

    @pl.when(kv == 0)
    def _init():
        m_ref[...] = jnp.full(m_ref.shape, -jnp.inf, jnp.float32)
        l_ref[...] = jnp.zeros(l_ref.shape, jnp.float32)
        acc_ref[...] = jnp.zeros(acc_ref.shape, jnp.float32)

    q = q_ref[0]   # (H, tq, D)
    k = k_ref[0]   # (H, tkv, D)
    v = v_ref[0]   # (H, tkv, D)

    # scores for all heads at once: (H, tq, tkv)
    s = jnp.einsum("hqd,hkd->hqk", q, k, preferred_element_type=jnp.float32) * scale
    bias = (cmask_ref[...] + pmask_ref[0]) * jnp.float32(-1e9)   # (tq, tkv)
    s = s + bias[None, :, :]

    m_prev = m_ref[...]                                           # (H, tq, 1)
    m_new = jnp.maximum(m_prev, jnp.max(s, axis=-1, keepdims=True))
    alpha = jnp.exp(m_prev - m_new)
    p = jnp.exp(s - m_new)                                        # (H, tq, tkv)
    l_ref[...] = alpha * l_ref[...] + jnp.sum(p, axis=-1, keepdims=True)
    acc_ref[...] = alpha * acc_ref[...] + jnp.einsum(
        "hqk,hkd->hqd", p.astype(v.dtype), v, preferred_element_type=jnp.float32
    )
    m_ref[...] = m_new

    @pl.when(kv == pl.num_programs(2) - 1)
    def _finalize():
        H, _, D = acc_ref.shape
        inv_l = pl.reciprocal(l_ref[...], approx=True)            # (H, tq, 1)
        out = (acc_ref[...] * inv_l).astype(o_ref.dtype)          # (H, tq, D)
        # write lane-dense (tq, H*D) output: head h lands at lanes [h*D, (h+1)*D)
        for h in range(H):
            o_ref[0, :, h * D:(h + 1) * D] = out[h]


def attention_pallas(q, k, v, causal_mask, pad_mask3, *,
                     q_block=None, kv_block=None, compute_dtype=jnp.float32):
    """q: (B,H,S,D), k/v: (B,H,T,D), causal_mask: (S,T), pad_mask3: (B,1,T).
    Returns attention output already merged to (B, S, H*D)."""
    B, H, S, D = q.shape
    T = k.shape[2]
    hidden = H * D

    tq = q_block if (q_block is not None and S % q_block == 0) else \
        _pick_tile(S, (256, 128))
    tkv = kv_block if (kv_block is not None and T % kv_block == 0) else \
        _pick_tile(T, (512, 256, 128))

    kernel = functools.partial(_flash_attn_kernel, scale=1.0 / math.sqrt(D))

    return pl.pallas_call(
        kernel,
        out_shape=jax.ShapeDtypeStruct((B, S, hidden), jnp.float32),
        grid_spec=pltpu.PrefetchScalarGridSpec(
            num_scalar_prefetch=0,
            grid=(B, S // tq, T // tkv),
            in_specs=[
                pl.BlockSpec((1, H, tq, D), lambda b, qi, kv: (b, 0, qi, 0)),
                pl.BlockSpec((1, H, tkv, D), lambda b, qi, kv: (b, 0, kv, 0)),
                pl.BlockSpec((1, H, tkv, D), lambda b, qi, kv: (b, 0, kv, 0)),
                pl.BlockSpec((tq, tkv), lambda b, qi, kv: (qi, kv)),
                pl.BlockSpec((1, 1, tkv), lambda b, qi, kv: (b, 0, kv)),
            ],
            out_specs=pl.BlockSpec((1, tq, hidden), lambda b, qi, kv: (b, qi, 0)),
            scratch_shapes=[
                pltpu.VMEM((H, tq, 1), jnp.float32),   # running max
                pltpu.VMEM((H, tq, 1), jnp.float32),   # running sum
                pltpu.VMEM((H, tq, D), jnp.float32),   # output accumulator
            ],
        ),
        compiler_params=pltpu.CompilerParams(
            dimension_semantics=("parallel", "parallel", "arbitrary"),
            vmem_limit_bytes=_VMEM_LIMIT,
        ),
        cost_estimate=pl.CostEstimate(
            flops=4 * B * H * S * T * D,
            transcendentals=B * H * S * T,
            bytes_accessed=4 * (B * H * S * D + 2 * B * H * T * D
                                + S * T + B * T + B * S * hidden),
        ),
    )(q.astype(compute_dtype), k.astype(compute_dtype), v.astype(compute_dtype),
      causal_mask.astype(jnp.float32), pad_mask3.astype(jnp.float32))


# ------------------------------- Module wrapper -------------------------------

def prepare_fused_params(params):
    """One-time parameter preparation: fuse Q/K/V weights and pre-transpose for the
    tiled GEMM kernel (avoids a per-forward-call weight transpose in HBM)."""
    wqkv = jnp.concatenate([params["Wq"], params["Wk"], params["Wv"]], axis=0)
    return {
        "num_heads": params["num_heads"],
        "WqkvT": jnp.asarray(wqkv.T),                                  # (hidden, 3*hidden)
        "bqkv": jnp.concatenate([params["bq"], params["bk"], params["bv"]]),
        "WoT": jnp.asarray(params["Wo"].T),                            # (hidden, hidden)
        "bo": params["bo"],
    }


def mha_with_kv_cache(fused_params, hidden_state, past_key_value=None,
                      causal_mask=None, pad_mask=None, use_cache=False,
                      compute_dtype=jnp.float32, q_block=None, kv_block=None):
    bsz, seq_len, hidden = hidden_state.shape
    num_heads = fused_params["num_heads"]
    head_dim = hidden // num_heads

    # Fused QKV projection: x is read from HBM once for all three projections.
    x2d = hidden_state.reshape(bsz * seq_len, hidden)
    qkv = linear_pallas(x2d, fused_params["WqkvT"], fused_params["bqkv"],
                        compute_dtype=compute_dtype)            # (M, 3*hidden)
    q2, k2, v2 = jnp.split(qkv, 3, axis=-1)

    def split_heads(t):  # (M, hidden) -> (B, H, S, D)  (layout required by the cache API)
        return t.reshape(bsz, seq_len, num_heads, head_dim).transpose(0, 2, 1, 3)

    q = split_heads(q2)
    k = split_heads(k2)
    v = split_heads(v2)

    if past_key_value is not None:
        # TODO(synk): for production incremental decoding, preallocate a max-length
        # cache and append in place (input_output_aliases / dynamic_update_slice)
        # instead of re-copying the whole cache in HBM every step.
        past_k, past_v = past_key_value
        k = jnp.concatenate([past_k, k], axis=2)
        v = jnp.concatenate([past_v, v], axis=2)
    new_past_key_value = (k, v) if use_cache else None

    total = k.shape[2]
    if causal_mask is None:
        causal_mask = jnp.zeros((seq_len, total), jnp.float32)
    if pad_mask is None:
        pad_mask = jnp.zeros((bsz, total), jnp.float32)
    pad_mask3 = pad_mask.reshape(bsz, 1, total)

    # Attention output comes back already merged to (B, S, hidden) (lane-dense),
    # so the output projection consumes it with no transpose.
    attn_out = attention_pallas(q, k, v, causal_mask, pad_mask3,
                                q_block=q_block, kv_block=kv_block,
                                compute_dtype=compute_dtype)
    out = linear_pallas(attn_out.reshape(bsz * seq_len, hidden),
                        fused_params["WoT"], fused_params["bo"],
                        compute_dtype=compute_dtype)
    out = out.reshape(bsz, seq_len, hidden)

    return (out, new_past_key_value) if use_cache else out


# ------------------------------- Pure-JAX reference -------------------------------

def reference(params, x, past_kv, causal_mask, pad_mask):
    bsz, seq_len, hidden = x.shape
    nh = params["num_heads"]
    hd = hidden // nh
    q = x @ params["Wq"].T + params["bq"]
    k = x @ params["Wk"].T + params["bk"]
    v = x @ params["Wv"].T + params["bv"]
    q = q.reshape(bsz, seq_len, nh, hd).transpose(0, 2, 1, 3)
    k = k.reshape(bsz, seq_len, nh, hd).transpose(0, 2, 1, 3)
    v = v.reshape(bsz, seq_len, nh, hd).transpose(0, 2, 1, 3)
    if past_kv is not None:
        k = jnp.concatenate([past_kv[0], k], axis=2)
        v = jnp.concatenate([past_kv[1], v], axis=2)
    s = jnp.einsum("bhqd,bhkd->bhqk", q, k) / jnp.sqrt(jnp.float32(hd))
    if causal_mask is not None:
        s = s + causal_mask * -1e9
    if pad_mask is not None:
        s = s + pad_mask[:, None, None, :] * -1e9
    p = jax.nn.softmax(s, axis=-1)
    o = jnp.einsum("bhqk,bhkd->bhqd", p, v)
    o = o.transpose(0, 2, 1, 3).reshape(bsz, seq_len, hidden)
    return o @ params["Wo"].T + params["bo"], k, v


# ------------------------------------ main ------------------------------------

if __name__ == "__main__":
    bsz, seq_len, hidden, num_heads = 2, 8, 128, 4
    head_dim = hidden // num_heads               # 32
    past_len = 248                               # total = 256 -> two 128-wide KV blocks
    total = past_len + seq_len

    key = jax.random.PRNGKey(0)
    ks = jax.random.split(key, 12)
    wscale = 1.0 / jnp.sqrt(jnp.float32(hidden))
    params = {
        "num_heads": num_heads,
        "Wq": jax.random.normal(ks[0], (hidden, hidden), jnp.float32) * wscale,
        "bq": jax.random.normal(ks[1], (hidden,), jnp.float32) * 0.1,
        "Wk": jax.random.normal(ks[2], (hidden, hidden), jnp.float32) * wscale,
        "bk": jax.random.normal(ks[3], (hidden,), jnp.float32) * 0.1,
        "Wv": jax.random.normal(ks[4], (hidden, hidden), jnp.float32) * wscale,
        "bv": jax.random.normal(ks[5], (hidden,), jnp.float32) * 0.1,
        "Wo": jax.random.normal(ks[6], (hidden, hidden), jnp.float32) * wscale,
        "bo": jax.random.normal(ks[7], (hidden,), jnp.float32) * 0.1,
    }
    fused = prepare_fused_params(params)   # done once at setup time

    x = jax.random.normal(ks[8], (bsz, seq_len, hidden), jnp.float32)
    past_k = jax.random.normal(ks[9], (bsz, num_heads, past_len, head_dim), jnp.float32) * 0.5
    past_v = jax.random.normal(ks[10], (bsz, num_heads, past_len, head_dim), jnp.float32) * 0.5

    # causal mask: query i (absolute position past_len+i) may not attend to future keys
    row = jnp.arange(seq_len)[:, None]
    col = jnp.arange(total)[None, :]
    causal_mask = (col > (past_len + row)).astype(jnp.float32)   # 1 = masked
    # pad mask: mask out the first 2 cached positions of batch element 1
    pad_mask = jnp.zeros((bsz, total), jnp.float32).at[1, :2].set(1.0)

    out, (new_k, new_v) = mha_with_kv_cache(
        fused, x,
        past_key_value=(past_k, past_v),
        causal_mask=causal_mask,
        pad_mask=pad_mask,
        use_cache=True,
        compute_dtype=jnp.float32,   # set to jnp.bfloat16 for 2x MXU rate on v6e/v7x
        kv_block=128,                # exercise the online-softmax multi-step path
    )
    jax.block_until_ready(out)
    jax.block_until_ready(new_k)
    jax.block_until_ready(new_v)

    ref_out, ref_k, ref_v = reference(params, x, (past_k, past_v), causal_mask, pad_mask)
    assert out.shape == (bsz, seq_len, hidden)
    assert new_k.shape == (bsz, num_heads, total, head_dim)
    assert new_v.shape == (bsz, num_heads, total, head_dim)
    assert jnp.allclose(new_k, ref_k, atol=1e-4, rtol=1e-4), "kv-cache K mismatch"
    assert jnp.allclose(new_v, ref_v, atol=1e-4, rtol=1e-4), "kv-cache V mismatch"
    # tolerance accounts for the approx reciprocal used in the softmax normalization
    assert jnp.allclose(out, ref_out, atol=2e-3, rtol=2e-3), "mismatch vs reference"

    print("KERNEL_OK")
</pallas_src>

<mosaic_0001>
module attributes {stable_mosaic.version = 11 : i64} {
  func.func @_linear_kernel(%arg0: i32, %arg1: i32, %arg2: i32, %arg3: memref<16x128xf32, #tpu.memory_space<vmem>>, %arg4: memref<128x128xf32, #tpu.memory_space<vmem>>, %arg5: memref<1x128xf32, #tpu.memory_space<vmem>>, %arg6: memref<16x128xf32, #tpu.memory_space<vmem>>, %arg7: memref<16x128xf32, #tpu.memory_space<vmem>>) attributes {dimension_semantics = [#tpu.dimension_semantics<parallel>, #tpu.dimension_semantics<parallel>, #tpu.dimension_semantics<arbitrary>], iteration_bounds = array<i64: 1, 3, 1>, scalar_prefetch = 0 : i64, scratch_operands = 1 : i64, tpu.core_type = #tpu.core_type<tc>, window_params = [{transform_indices = @transform_0, window_bounds = array<i64: 16, 128>}, {transform_indices = @transform_1, window_bounds = array<i64: 128, 128>}, {transform_indices = @transform_2, window_bounds = array<i64: 1, 128>}, {transform_indices = @transform_3, window_bounds = array<i64: 16, 128>}]} {
    %c0_i32 = arith.constant 0 : i32
    %0 = arith.cmpi eq, %arg2, %c0_i32 : i32
    %1 = arith.extui %0 : i1 to i32
    %c0_i32_0 = arith.constant 0 : i32
    %2 = arith.cmpi ne, %1, %c0_i32_0 : i32
    scf.if %2 {
      %cst_10 = arith.constant 0.000000e+00 : f32
      %12 = vector.broadcast %cst_10 : f32 to vector<16x128xf32>
      %c0_11 = arith.constant 0 : index
      %c0_12 = arith.constant 0 : index
      %13 = vector.load %arg7[%c0_11, %c0_12] : memref<16x128xf32, #tpu.memory_space<vmem>>, vector<16x128xf32>
      tpu.vector_store %arg7[%c0_11, %c0_12], %12 {strides = array<i32>} : memref<16x128xf32, #tpu.memory_space<vmem>>, vector<16x128xf32>,
    } else {
    }
    %c0 = arith.constant 0 : index
    %c0_1 = arith.constant 0 : index
    %3 = vector.load %arg7[%c0, %c0_1] : memref<16x128xf32, #tpu.memory_space<vmem>>, vector<16x128xf32>
    %c0_2 = arith.constant 0 : index
    %c0_3 = arith.constant 0 : index
    %4 = vector.load %arg3[%c0_2, %c0_3] : memref<16x128xf32, #tpu.memory_space<vmem>>, vector<16x128xf32>
    %c0_4 = arith.constant 0 : index
    %c0_5 = arith.constant 0 : index
    %5 = vector.load %arg4[%c0_4, %c0_5] : memref<128x128xf32, #tpu.memory_space<vmem>>, vector<128x128xf32>
    %cst = arith.constant dense<0.000000e+00> : vector<16x128xf32>
    %6 = tpu.matmul %4, %5, %cst {dimension_numbers = #tpu.dot_dimension_numbers<[1], [0], [0], [1], [0, 0, 1, 1], [], []>} : vector<16x128xf32>, vector<128x128xf32>, vector<16x128xf32> -> vector<16x128xf32>
    %7 = arith.addf %3, %6 : vector<16x128xf32>
    %c0_6 = arith.constant 0 : index
    %c0_7 = arith.constant 0 : index
    %8 = vector.load %arg7[%c0_6, %c0_7] : memref<16x128xf32, #tpu.memory_space<vmem>>, vector<16x128xf32>
    tpu.vector_store %arg7[%c0_6, %c0_7], %7 {strides = array<i32>} : memref<16x128xf32, #tpu.memory_space<vmem>>, vector<16x128xf32>,
    %c0_i32_8 = arith.constant 0 : i32
    %9 = arith.cmpi eq, %arg2, %c0_i32_8 : i32
    %10 = arith.extui %9 : i1 to i32
    %c0_i32_9 = arith.constant 0 : i32
    %11 = arith.cmpi ne, %10, %c0_i32_9 : i32
    scf.if %11 {
      %c0_10 = arith.constant 0 : index
      %c0_11 = arith.constant 0 : index
      %12 = vector.load %arg7[%c0_10, %c0_11] : memref<16x128xf32, #tpu.memory_space<vmem>>, vector<16x128xf32>
      %c0_12 = arith.constant 0 : index
      %c0_13 = arith.constant 0 : index
      %13 = vector.load %arg5[%c0_12, %c0_13] : memref<1x128xf32, #tpu.memory_space<vmem>>, vector<1x128xf32>
      %14 = vector.broadcast %13 : vector<1x128xf32> to vector<16x128xf32>
      %15 = arith.addf %12, %14 : vector<16x128xf32>
      %c0_14 = arith.constant 0 : index
      %c0_15 = arith.constant 0 : index
      %16 = vector.load %arg6[%c0_14, %c0_15] : memref<16x128xf32, #tpu.memory_space<vmem>>, vector<16x128xf32>
      tpu.vector_store %arg6[%c0_14, %c0_15], %15 {strides = array<i32>} : memref<16x128xf32, #tpu.memory_space<vmem>>, vector<16x128xf32>,
    } else {
    }
    return
  }
  func.func @transform_0(%arg0: i32, %arg1: i32, %arg2: i32) -> (i32, i32) {
    %c0_i32 = arith.constant 0 : i32
    return %arg0, %arg2 : i32, i32
  }
  func.func @transform_1(%arg0: i32, %arg1: i32, %arg2: i32) -> (i32, i32) {
    %c0_i32 = arith.constant 0 : i32
    return %arg2, %arg1 : i32, i32
  }
  func.func @transform_2(%arg0: i32, %arg1: i32, %arg2: i32) -> (i32, i32) {
    %c0_i32 = arith.constant 0 : i32
    %c0_i32_0 = arith.constant 0 : i32
    return %c0_i32, %arg1 : i32, i32
  }
  func.func @transform_3(%arg0: i32, %arg1: i32, %arg2: i32) -> (i32, i32) {
    %c0_i32 = arith.constant 0 : i32
    return %arg0, %arg1 : i32, i32
  }
}

</mosaic_0001>

<llo_original>
// kernel: tpu_custom_call.1
$region0: #{tpu_custom_call.1}
  #allocation0 [shape = 'u32[]', space=smem, size = 0x4, offset = 0x4, fixed_abs, tag = 'smem constant byte address 0x4 - core index']
  #allocation1 [shape = 'u32[144,128]{1,0:T(1,128)}', space=vmem, size = 0x12000, scoped, tag = 'internal scratch']
  #allocation2 [shape = 'f32[16,128]{1,0:T(8,128)}', space=vmem, size = 0x2000, scoped, tag = 'scratch operand']
  %s0 = inlined_call_operand.hbm [shape: f32[16,128], index: 0, kind: input, shape index: {}]
  %s1 = inlined_call_operand.hbm [shape: f32[128,384], index: 1, kind: input, shape index: {}]
  %s2 = inlined_call_operand.hbm [shape: f32[1,384], index: 2, kind: input, shape index: {}]
  %s3 = inlined_call_operand.hbm [shape: f32[16,384], index: 3, kind: output, shape index: {}]
  %s4 = sld [smem:[#allocation0]]
  $region65: #{tpu_custom_call.1} parent=0
    _
  %s6 = ssub.s32 1, %s4
  %s7 = scalar_select 0, %s6, %s4
  $region1: #{tpu_custom_call.1} parent=0
    #allocation3 [shape = 'u8[8192]{0}', space=vmem, size = 0x2000, scoped, tag = 'input window, operand 0, single buffered']
    #allocation4 [shape = 's32[2]{0}', space=sflag, size = 0x8, scoped, tag = 'scoped memory for tpu_custom_call.1']
    #allocation5 [shape = 's32[2]{0}', space=sflag, size = 0x8, scoped, tag = 'scoped memory for tpu_custom_call.1']
    #allocation6 [shape = 'u8[131072]{0}', space=vmem, size = 0x20000, scoped, tag = 'input window, operand 1']
    #allocation7 [shape = 's32[2]{0}', space=sflag, size = 0x8, scoped, tag = 'scoped memory for tpu_custom_call.1']
    #allocation8 [shape = 'u8[1024]{0}', space=vmem, size = 0x400, scoped, tag = 'input window, operand 2']
    #allocation9 [shape = 'u8[16384]{0}', space=vmem, size = 0x4000, scoped, tag = 'output window, operand 0']
    %8 = vsyncpa [#allocation4], 0
    %9 = vsyncpa [#allocation7], 0
    %s10 = scalar_lea.sflag [#allocation7], 1
    %11 = vsyncpa %s10, 0
    %12 = vsyncpa [#allocation5], 0
    %s13 = scalar_lea.sflag [#allocation5], 1
    %14 = vsyncpa %s13, 0
    loop: start=0, step=1, limit=5
    $region2: #{tpu_custom_call.1} parent=1 // loop_pre_header
      _
    $region3: #{tpu_custom_call.1} parent=1 // loop_header
      %s16 = sphi 0, %s20
      %p17 = scmp.ge.s32.totalorder %s16, 5
      %s23 = sphi 0, %s42
      %s24 = sphi 0, %s38
      %s25 = sphi 0, %s34
      %s26 = sphi 0, %s23
      %s27 = sphi 0, %s24
      %s28 = sphi 0, %s25
      %s29 = sphi 0, %s26
      %s30 = sphi 0, %s27
      %s31 = sphi 0, %s28
      %s47 = sphi 0, %s49
      %s50 = sphi 0, %s47
      %s51 = sphi 0, %s50
      %s67 = sphi 0, %s51
      %s75 = sphi 0, %s77
      %s78 = sphi 0, %s75
      %s79 = sphi 0, %s78
      %s95 = sphi 0, %s79
      %s101 = sphi 0, %s103
      %s104 = sphi 0, %s101
      %s105 = sphi 0, %s104
      %s121 = sphi 0, %s105
      %s129 = sphi 0, %s131
      %s132 = sphi 0, %s129
      %s133 = sphi 0, %s132
      %s149 = sphi 0, %s133
    $region4: #{tpu_custom_call.1} parent=1 // loop_header_branch
      %19 = sbr.rel (%p17) target = $region8
    $region5: #{tpu_custom_call.1} parent=1 // loop_body
      %s21 = ssub.s32 %s16, 1
      %s22 = ssub.s32 %s16, 2
      %s32 = sadd.s32 1, %s25
      %p33 = scmp.ge.s32.totalorder %s32, 1
      %s34 = scalar_select %p33, 0, %s32
      %s35 = sadd.s32 1, %s24
      %s36 = scalar_select %p33, %s35, %s24
      %p37 = scmp.ge.s32.totalorder %s36, 3
      %s38 = scalar_select %p37, 0, %s36
      %s39 = sadd.s32 1, %s23
      %s40 = scalar_select %p37, %s39, %s23
      %p41 = scmp.ge.s32.totalorder %s40, 1
      %s42 = scalar_select %p41, 0, %s40
      %s43 = ssub.s32 %s23, %s42
      %s44 = ssub.s32 %s25, %s34
      %s45 = sor.u32 %s43, %s44
      %p46 = scmp.eq.s32.totalorder %s45, 0
      %s48 = sadd.s32 %s47, 1
      %s49 = scalar_select %p46, %s47, %s48
      %p52 = pneg %p46
      %p53 = scmp.eq.s32.totalorder %s16, 2
      %p54 = por %p52, %p53
      %p55 = scmp.ne.s32.totalorder %s47, %s50
      %p56 = scmp.eq.s32.totalorder %s16, 0
      %p57 = por %p55, %p56
      %p58 = scmp.ne.s32.totalorder %s47, %s50
      %p59 = scmp.eq.s32.totalorder %s21, 2
      %p60 = por %p58, %p59
      %p61 = scmp.ne.s32.totalorder %s50, %s51
      %p62 = scmp.eq.s32.totalorder %s21, 0
      %p63 = por %p61, %p62
      %p64 = scmp.ne.s32.totalorder %s50, %s51
      %p65 = scmp.eq.s32.totalorder %s22, 2
      %p66 = por %p64, %p65
      %p68 = scmp.ne.s32.totalorder %s51, %s67
      %p69 = scmp.eq.s32.totalorder %s22, 0
      %p70 = por %p68, %p69
      %s71 = ssub.s32 %s25, %s34
      %s72 = ssub.s32 %s24, %s38
      %s73 = sor.u32 %s71, %s72
      %p74 = scmp.eq.s32.totalorder %s73, 0
      %s76 = sadd.s32 %s75, 1
      %s77 = scalar_select %p74, %s75, %s76
      %p80 = pneg %p74
      %p81 = scmp.eq.s32.totalorder %s16, 2
      %p82 = por %p80, %p81
      %p83 = scmp.ne.s32.totalorder %s75, %s78
      %p84 = scmp.eq.s32.totalorder %s16, 0
      %p85 = por %p83, %p84
      %p86 = scmp.ne.s32.totalorder %s75, %s78
      %p87 = scmp.eq.s32.totalorder %s21, 2
      %p88 = por %p86, %p87
      %p89 = scmp.ne.s32.totalorder %s78, %s79
      %p90 = scmp.eq.s32.totalorder %s21, 0
      %p91 = por %p89, %p90
      %p92 = scmp.ne.s32.totalorder %s78, %s79
      %p93 = scmp.eq.s32.totalorder %s22, 2
      %p94 = por %p92, %p93
      %p96 = scmp.ne.s32.totalorder %s79, %s95
      %p97 = scmp.eq.s32.totalorder %s22, 0
      %p98 = por %p96, %p97
      %s99 = ssub.s32 %s24, %s38
      %p100 = scmp.eq.s32.totalorder %s99, 0
      %s102 = sadd.s32 %s101, 1
      %s103 = scalar_select %p100, %s101, %s102
      %p106 = pneg %p100
      %p107 = scmp.eq.s32.totalorder %s16, 2
      %p108 = por %p106, %p107
      %p109 = scmp.ne.s32.totalorder %s101, %s104
      %p110 = scmp.eq.s32.totalorder %s16, 0
      %p111 = por %p109, %p110
      %p112 = scmp.ne.s32.totalorder %s101, %s104
      %p113 = scmp.eq.s32.totalorder %s21, 2
      %p114 = por %p112, %p113
      %p115 = scmp.ne.s32.totalorder %s104, %s105
      %p116 = scmp.eq.s32.totalorder %s21, 0
      %p117 = por %p115, %p116
      %p118 = scmp.ne.s32.totalorder %s104, %s105
      %p119 = scmp.eq.s32.totalorder %s22, 2
      %p120 = por %p118, %p119
      %p122 = scmp.ne.s32.totalorder %s105, %s121
      %p123 = scmp.eq.s32.totalorder %s22, 0
      %p124 = por %p122, %p123
      %s125 = ssub.s32 %s23, %s42
      %s126 = ssub.s32 %s24, %s38
      %s127 = sor.u32 %s125, %s126
      %p128 = scmp.eq.s32.totalorder %s127, 0
      %s130 = sadd.s32 %s129, 1
      %s131 = scalar_select %p128, %s129, %s130
      %p134 = pneg %p128
      %p135 = scmp.eq.s32.totalorder %s16, 2
      %p136 = por %p134, %p135
      %p137 = scmp.ne.s32.totalorder %s129, %s132
      %p138 = scmp.eq.s32.totalorder %s16, 0
      %p139 = por %p137, %p138
      %p140 = scmp.ne.s32.totalorder %s129, %s132
      %p141 = scmp.eq.s32.totalorder %s21, 2
      %p142 = por %p140, %p141
      %p143 = scmp.ne.s32.totalorder %s132, %s133
      %p144 = scmp.eq.s32.totalorder %s21, 0
      %p145 = por %p143, %p144
      %p146 = scmp.ne.s32.totalorder %s132, %s133
      %p147 = scmp.eq.s32.totalorder %s22, 2
      %p148 = por %p146, %p147
      %p150 = scmp.ne.s32.totalorder %s133, %s149
      %p151 = scmp.eq.s32.totalorder %s22, 0
      %p152 = por %p150, %p151
      %p153 = scmp.le.s32.totalorder 1, %s16
      %p154 = scmp.lt.s32.totalorder %s16, 4
      %p155 = pnand %p153, %p154
      %p156 = pneg %p155
      // Predicated region
      $region9: #{tpu_custom_call.1} parent=5 // pred_check
        _
      $region10: #{tpu_custom_call.1} parent=5 // pred_check_branch
        %158 = sbr.rel (%p155) target = $region12
      $region11: #{tpu_custom_call.1} parent=5 // pred_region
        %s159 = ssub.s32 %s16, 1
        // Predicated region
        $region13: #{tpu_custom_call.1} parent=11 // pred_check
          %p160 = pneg %p63
        $region14: #{tpu_custom_call.1} parent=11 // pred_check_branch
          %162 = sbr.rel (%p160) target = $region16
        $region15: #{tpu_custom_call.1} parent=11 // pred_region
          %s163 = smul.u32 2, %s26
          %s165 = ssub.s32 256, 256
          %166 = vsyncadd [#allocation4], %s165
          %s167 = sadd.s32 %s28, %s163
          %s168 = smul.addr %s167, 128
          %s169 = scalar_lea.hbm %s0, %s168
          %s170 = sshll.u32 [#allocation3], 4
          %s171 = int_to_ptr.vmem [resolvable:$true] %s170
          %176 = dma.hbm_to_vmem [thread:$0]  %s169, 256, %s171, [#allocation4], 128, 128, 8
        $region16: #{tpu_custom_call.1} parent=11 // pred_fallthru
          _
      $region12: #{tpu_custom_call.1} parent=5 // pred_fallthru
        _
      %p177 = scmp.lt.s32.totalorder %s16, 3
      // Predicated region
      $region17: #{tpu_custom_call.1} parent=5 // pred_check
        %p178 = pneg %p177
      $region18: #{tpu_custom_call.1} parent=5 // pred_check_branch
        %180 = sbr.rel (%p178) target = $region20
      $region19: #{tpu_custom_call.1} parent=5 // pred_region
        // Predicated region
        $region21: #{tpu_custom_call.1} parent=19 // pred_check
          %p181 = pneg %p85
        $region22: #{tpu_custom_call.1} parent=19 // pred_check_branch
          %183 = sbr.rel (%p181) target = $region24
        $region23: #{tpu_custom_call.1} parent=19 // pred_region
          %s184 = sand.u32 %s16, 1
          %s185 = scalar_lea.sflag [#allocation7], %s184
          %s186 = sand.u32 %s75, 1
          %s187 = smul.addr %s186, 128
          %s188 = scalar_lea.vmem [#allocation6], %s187
          %s189 = smul.u32 16, %s25
          %s191 = ssub.s32 2048, 2048
          %192 = vsyncadd %s185, %s191
          %s193 = smul.addr %s189, 3
          %s194 = sadd.s32 %s24, %s193
          %s195 = smul.addr %s194, 128
          %s196 = scalar_lea.hbm %s1, %s195
          %s197 = sshll.u32 %s188, 4
          %s198 = int_to_ptr.vmem [resolvable:$true] %s197
          %203 = dma.hbm_to_vmem [thread:$0]  %s196, 2048, %s198, %s185, 384, 128, 8
        $region24: #{tpu_custom_call.1} parent=19 // pred_fallthru
          _
        // Predicated region
        $region25: #{tpu_custom_call.1} parent=19 // pred_check
          %p204 = pneg %p111
        $region26: #{tpu_custom_call.1} parent=19 // pred_check_branch
          %206 = sbr.rel (%p204) target = $region28
        $region27: #{tpu_custom_call.1} parent=19 // pred_region
          %s207 = sand.u32 %s16, 1
          %s208 = scalar_lea.sflag [#allocation7], %s207
          %s209 = sand.u32 %s101, 1
          %s210 = scalar_lea.vmem [#allocation8], %s209
          %s212 = ssub.s32 16, 16
          %213 = vsyncadd %s208, %s212
          %s214 = smul.addr %s24, 16
          %s215 = scalar_lea.hbm %s2, %s214
          %s217 = sshll.u32 %s210, 4
          %s218 = int_to_ptr.vmem [resolvable:$true] %s217
          %220 = dma.hbm_to_vmem [thread:$0]  %s215, 16, %s218, %s208
        $region28: #{tpu_custom_call.1} parent=19 // pred_fallthru
          _
      $region20: #{tpu_custom_call.1} parent=5 // pred_fallthru
        _
      %p221 = scmp.le.s32.totalorder 1, %s16
      %p222 = scmp.lt.s32.totalorder %s16, 4
      %p223 = pnand %p221, %p222
      %p224 = pneg %p223
      // Predicated region
      $region29: #{tpu_custom_call.1} parent=5 // pred_check
        _
      $region30: #{tpu_custom_call.1} parent=5 // pred_check_branch
        %226 = sbr.rel (%p223) target = $region32
      $region31: #{tpu_custom_call.1} parent=5 // pred_region
        %s227 = ssub.s32 %s16, 1
        // Predicated region
        $region33: #{tpu_custom_call.1} parent=31 // pred_check
          %p228 = pneg %p63
        $region34: #{tpu_custom_call.1} parent=31 // pred_check_branch
          %230 = sbr.rel (%p228) target = $region36
        $region35: #{tpu_custom_call.1} parent=31 // pred_region
          %231 = dma.done [#allocation4], 256
        $region36: #{tpu_custom_call.1} parent=31 // pred_fallthru
          _
        %s232 = sand.u32 %s21, 1
        %s233 = scalar_lea.sflag [#allocation7], %s232
        %s234 = sand.u32 %s78, 1
        %s235 = smul.addr %s234, 128
        %s236 = scalar_lea.vmem [#allocation6], %s235
        // Predicated region
        $region37: #{tpu_custom_call.1} parent=31 // pred_check
          %p237 = pneg %p91
        $region38: #{tpu_custom_call.1} parent=31 // pred_check_branch
          %239 = sbr.rel (%p237) target = $region40
        $region39: #{tpu_custom_call.1} parent=31 // pred_region
          %240 = dma.done %s233, 2048
        $region40: #{tpu_custom_call.1} parent=31 // pred_fallthru
          _
        %s241 = sand.u32 %s21, 1
        %s242 = scalar_lea.sflag [#allocation7], %s241
        %s243 = sand.u32 %s104, 1
        %s244 = scalar_lea.vmem [#allocation8], %s243
        // Predicated region
        $region41: #{tpu_custom_call.1} parent=31 // pred_check
          %p245 = pneg %p117
        $region42: #{tpu_custom_call.1} parent=31 // pred_check_branch
          %247 = sbr.rel (%p245) target = $region44
        $region43: #{tpu_custom_call.1} parent=31 // pred_region
          %248 = dma.done %s242, 16
        $region44: #{tpu_custom_call.1} parent=31 // pred_fallthru
          _
        %p249 = pneg %p63
        %p250 = pneg %p60
        %s251 = sand.u32 %s21, 1
        %s252 = scalar_lea.sflag [#allocation7], %s251
        %s253 = sand.u32 %s78, 1
        %s254 = smul.addr %s253, 128
        %s255 = scalar_lea.vmem [#allocation6], %s254
        %p256 = pneg %p91
        %p257 = pneg %p88
        %s258 = sand.u32 %s21, 1
        %s259 = scalar_lea.sflag [#allocation7], %s258
        %s260 = sand.u32 %s104, 1
        %s261 = scalar_lea.vmem [#allocation8], %s260
        %p262 = pneg %p117
        %p263 = pneg %p114
        %p264 = pneg %p145
        %p265 = pneg %p142
        %s266 = sand.u32 %s132, 1
        %s267 = scalar_lea.sflag [#allocation5], %s266
        %s268 = sand.u32 %s132, 1
        %s269 = smul.addr %s268, 16
        %s270 = scalar_lea.vmem [#allocation9], %s269
        %s271 = smul.u32 2, %s26
        %s272 = smul.u32 16, %s28
        %s273 = smul.u32 2, %s26
        %p274 = scmp.eq.s32.totalorder %s28, 0
        // Predicated region
        $region45: #{tpu_custom_call.1} parent=31 // pred_check
          %p275 = pneg %p274
        $region46: #{tpu_custom_call.1} parent=31 // pred_check_branch
          %277 = sbr.rel (%p275) target = $region48
        $region47: #{tpu_custom_call.1} parent=31 // pred_region
          %278 = vst [vmem:[#allocation2] sm:$0xff] 0.0
          %279 = vst [vmem:[#allocation2 + $0x8] sm:$0xff] 0.0
        $region48: #{tpu_custom_call.1} parent=31 // pred_fallthru
          _
        %v280 = vld [vmem:[#allocation2] sm:$0xff]
        %v281 = vld [vmem:[#allocation2 + $0x8] sm:$0xff]
        %v282 = vld [vmem:[#allocation3] sm:$0xff]
        %v283 = vld [vmem:[#allocation3 + $0x8] sm:$0xff]
        %v284 = vld [vmem:[%s236] sm:$0xff]
        %v285 = vld [vmem:[%s236 + $0x8] sm:$0xff]
        %v286 = vld [vmem:[%s236 + $0x10] sm:$0xff]
        %v287 = vld [vmem:[%s236 + $0x18] sm:$0xff]
        %v288 = vld [vmem:[%s236 + $0x20] sm:$0xff]
        %v289 = vld [vmem:[%s236 + $0x28] sm:$0xff]
        %v290 = vld [vmem:[%s236 + $0x30] sm:$0xff]
        %v291 = vld [vmem:[%s236 + $0x38] sm:$0xff]
        %v292 = vld [vmem:[%s236 + $0x40] sm:$0xff]
        %v293 = vld [vmem:[%s236 + $0x48] sm:$0xff]
        %v294 = vld [vmem:[%s236 + $0x50] sm:$0xff]
        %v295 = vld [vmem:[%s236 + $0x58] sm:$0xff]
        %v296 = vld [vmem:[%s236 + $0x60] sm:$0xff]
        %v297 = vld [vmem:[%s236 + $0x68] sm:$0xff]
        %v298 = vld [vmem:[%s236 + $0x70] sm:$0xff]
        %v299 = vld [vmem:[%s236 + $0x78] sm:$0xff]
        %300 = vmatprep.subr.mxu0 0.0
        %301 = vmatpush1.msra.mxu0 %v284
        %302 = vmatprep.subr.mxu0 0.0
        %303 = vmatpush1.msra.mxu0 %v285
        %304 = vmatprep.subr.mxu0 0.0
        %305 = vmatpush1.msra.mxu0 %v286
        %306 = vmatprep.subr.mxu0 0.0
        %307 = vmatpush1.msra.mxu0 %v287
        %308 = vmatprep.subr.mxu0 0.0
        %309 = vmatpush1.msra.mxu0 %v288
        %310 = vmatprep.subr.mxu0 0.0
        %311 = vmatpush1.msra.mxu0 %v289
        %312 = vmatprep.subr.mxu0 0.0
        %313 = vmatpush1.msra.mxu0 %v290
        %314 = vmatprep.subr.mxu0 0.0
        %315 = vmatpush1.msra.mxu0 %v291
        %316 = vmatprep.subr.mxu0 0.0
        %317 = vmatpush1.msra.mxu0 %v292
        %318 = vmatprep.subr.mxu0 0.0
        %319 = vmatpush1.msra.mxu0 %v293
        %320 = vmatprep.subr.mxu0 0.0
        %321 = vmatpush1.msra.mxu0 %v294
        %322 = vmatprep.subr.mxu0 0.0
        %323 = vmatpush1.msra.mxu0 %v295
        %324 = vmatprep.subr.mxu0 0.0
        %325 = vmatpush1.msra.mxu0 %v296
        %326 = vmatprep.subr.mxu0 0.0
        %327 = vmatpush1.msra.mxu0 %v297
        %328 = vmatprep.subr.mxu0 0.0
        %329 = vmatpush1.msra.mxu0 %v298
        %330 = vmatprep.subr.mxu0 0.0
        %331 = vmatpush1.msra.mxu0 %v299
        %332 = vmatprep.subr.mxu0 0.0
        %333 = vmatpush1.msra.mxu0 0.0
        %334 = vmatprep.subr.mxu0 0.0
        %335 = vmatpush1.msra.mxu0 0.0
        %336 = vmatprep.subr.mxu0 0.0
        %337 = vmatpush1.msra.mxu0 0.0
        %338 = vmatprep.subr.mxu0 0.0
        %339 = vmatpush1.msra.mxu0 0.0
        %340 = vmatprep.subr.mxu0 0.0
        %341 = vmatpush1.msra.mxu0 0.0
        %342 = vmatprep.subr.mxu0 0.0
        %343 = vmatpush1.msra.mxu0 0.0
        %344 = vmatprep.subr.mxu0 0.0
        %345 = vmatpush1.msra.mxu0 0.0
        %346 = vmatprep.subr.mxu0 0.0
        %347 = vmatpush1.msra.mxu0 0.0
        %348 = vmatprep.subr.mxu0 0.0
        %349 = vmatpush1.msra.mxu0 0.0
        %350 = vmatprep.subr.mxu0 0.0
        %351 = vmatpush1.msra.mxu0 0.0
        %352 = vmatprep.subr.mxu0 0.0
        %353 = vmatpush1.msra.mxu0 0.0
        %354 = vmatprep.subr.mxu0 0.0
        %355 = vmatpush1.msra.mxu0 0.0
        %356 = vmatprep.subr.mxu0 0.0
        %357 = vmatpush1.msra.mxu0 0.0
        %358 = vmatprep.subr.mxu0 0.0
        %359 = vmatpush1.msra.mxu0 0.0
        %360 = vmatprep.subr.mxu0 0.0
        %361 = vmatpush1.msra.mxu0 0.0
        %362 = vmatprep.subr.mxu0 0.0
        %363 = vmatpush1.msra.mxu0 0.0
        %364 = vmatprep.mubr.f32.mxu0 0.0
        %365 = vmatmul.mubr.f32.gmra.mrb[0].mxu0 %v282
        %v366 = vpop.f32.mrb[0].mxu0
        %v367 = vadd.f32 0.0, %v366
        %v368 = vpop.f32.mrb[0].mxu0
        %369 = vmatprep.mubr.f32.mxu0 0.0
        %370 = vmatmul.mubr.f32.gmra.mrb[0].mxu0 %v283
        %v371 = vpop.f32.mrb[0].mxu0
        %v372 = vadd.f32 0.0, %v371
        %v373 = vpop.f32.mrb[0].mxu0
        %374 = vdwg.mxu0
        %v375 = vadd.f32 %v280, %v367
        %v376 = vadd.f32 %v281, %v372
        %377 = vst [vmem:[#allocation2] sm:$0xff] %v375
        %378 = vst [vmem:[#allocation2 + $0x8] sm:$0xff] %v376
        // Predicated region
        $region49: #{tpu_custom_call.1} parent=31 // pred_check
          %p379 = pneg %p274
        $region50: #{tpu_custom_call.1} parent=31 // pred_check_branch
          %381 = sbr.rel (%p379) target = $region52
        $region51: #{tpu_custom_call.1} parent=31 // pred_region
          %v382 = vld [vmem:[#allocation2] sm:$0xff]
          %v383 = vld [vmem:[#allocation2 + $0x8] sm:$0xff]
          %v384 = vld [vmem:[%s244] sm:$0x1]
          %v386 = vlaneseq
          %v387 = vshrl.u32 %v386, 7
          %v388 = vsub.s32 0, %v387
          %v389 = vrot.slane %v384, %v388
          %v391 = vadd.f32 %v382, %v389
          %v392 = vadd.f32 %v383, %v389
          %393 = vst [vmem:[%s270] sm:$0xff] %v391
          %394 = vst [vmem:[%s270 + $0x8] sm:$0xff] %v392
        $region52: #{tpu_custom_call.1} parent=31 // pred_fallthru
          _
        %s395 = sand.u32 %s132, 1
        %s396 = scalar_lea.sflag [#allocation5], %s395
        %s397 = sand.u32 %s132, 1
        %s398 = smul.addr %s397, 16
        %s399 = scalar_lea.vmem [#allocation9], %s398
        // Predicated region
        $region53: #{tpu_custom_call.1} parent=31 // pred_check
          %p400 = pneg %p142
        $region54: #{tpu_custom_call.1} parent=31 // pred_check_branch
          %402 = sbr.rel (%p400) target = $region56
        $region55: #{tpu_custom_call.1} parent=31 // pred_region
          %s403 = smul.u32 2, %s26
          %s405 = ssub.s32 256, 256
          %406 = vsyncadd %s396, %s405
          %s407 = smul.addr %s403, 3
          %s408 = sadd.s32 %s27, %s407
          %s409 = smul.addr %s408, 128
          %s410 = scalar_lea.hbm %s3, %s409
          %s411 = sshll.u32 %s399, 4
          %s412 = int_to_ptr.vmem [resolvable:$true] %s411
          %417 = dma.vmem_to_hbm [thread:$0]  %s412, 256, %s410, %s396, 128, 384, 8
        $region56: #{tpu_custom_call.1} parent=31 // pred_fallthru
          _
      $region32: #{tpu_custom_call.1} parent=5 // pred_fallthru
        _
      %p418 = scmp.le.s32.totalorder 2, %s16
      // Predicated region
      $region57: #{tpu_custom_call.1} parent=5 // pred_check
        %p419 = pneg %p418
      $region58: #{tpu_custom_call.1} parent=5 // pred_check_branch
        %421 = sbr.rel (%p419) target = $region60
      $region59: #{tpu_custom_call.1} parent=5 // pred_region
        %s422 = ssub.s32 %s16, 2
        // Predicated region
        $region61: #{tpu_custom_call.1} parent=59 // pred_check
          %p423 = pneg %p148
        $region62: #{tpu_custom_call.1} parent=59 // pred_check_branch
          %425 = sbr.rel (%p423) target = $region64
        $region63: #{tpu_custom_call.1} parent=59 // pred_region
          %s426 = sand.u32 %s133, 1
          %s427 = scalar_lea.sflag [#allocation5], %s426
          %s428 = sand.u32 %s133, 1
          %s429 = smul.addr %s428, 16
          %s430 = scalar_lea.vmem [#allocation9], %s429
          %431 = dma.done %s427, 256
        $region64: #{tpu_custom_call.1} parent=59 // pred_fallthru
          _
      $region60: #{tpu_custom_call.1} parent=5 // pred_fallthru
        _
    $region6: #{tpu_custom_call.1} parent=1 // loop_footer
      %s20 = sadd.s32 1, %s16
    $region7: #{tpu_custom_call.1} parent=1 // loop_footer_branch
      %15 = sbr.rel target = $region3
    $region8: #{tpu_custom_call.1} parent=1 // loop_exit
      _
    %432 = vsyncpa [#allocation4], 1
    %s433 = scalar_lea.sflag [#allocation4], 1
    %434 = vsyncpa %s433, 1
    %435 = vsyncpa [#allocation7], 1
    %s436 = scalar_lea.sflag [#allocation7], 1
    %437 = vsyncpa %s436, 1
    %438 = vsyncpa [#allocation5], 1
    %s439 = scalar_lea.sflag [#allocation5], 1
    %440 = vsyncpa %s439, 1

</llo_original>
